<compile_context>
chip_gen: v7x
topology: tpu7x:2x2x1
jax: 0.10.0
libtpu: 0.0.40
codegen_flags: <defaults>
</compile_context>

<pallas_src>
import functools

import jax
import jax.numpy as jnp
from jax import lax
from jax.experimental import pallas as pl
from jax.experimental.pallas import tpu as pltpu


# -------------------------------------------------------------------------
# Helpers
# -------------------------------------------------------------------------
def _is_pow2(n: int) -> bool:
    return n > 0 and (n & (n - 1)) == 0


def build_channel_tables(octaves: int, include_constant: bool):
    """Per-channel (1/div, offset) mirroring TriangularPositionalEncoding1D.__init__.

    The constant channel is represented as (inv=0.0, offset=-0.5) so that
    tri(0 - (-0.5)) = 2*|0.5 - 1| - 1 = 0 exactly (== torch.zeros row).
    """
    inv_divs, offsets = [], []
    for octave in range(octaves):
        div = float(2 ** octave)
        for i, offset in enumerate((0.0, 0.5)):
            if octave == 0 and i == 1:
                continue
            inv_divs.append(1.0 / div)
            offsets.append(float(offset))
    if include_constant:
        inv_divs.append(0.0)
        offsets.append(-0.5)
    return inv_divs, offsets


# TODO(synk): convert_coordinate_start was not provided in the source file;
# assumed semantics (used by the kernel and the reference): coordinates is
# (B, 2) = (y_start, x_start) and every pixel (r, c) of the H x W window has
# absolute coordinates (y_start + r*stride, x_start + c*stride), row-major.
def convert_coordinate_start(coordinates, h, w, stride=1):
    coordinates = coordinates.astype(jnp.int32)
    ys = jnp.arange(h, dtype=jnp.int32) * stride
    xs = jnp.arange(w, dtype=jnp.int32) * stride
    grid_y = jnp.repeat(ys, w)  # (h*w,)
    grid_x = jnp.tile(xs, h)    # (h*w,)
    full_y = coordinates[:, 0:1] + grid_y[None, :]
    full_x = coordinates[:, 1:2] + grid_x[None, :]
    return full_x, full_y


# -------------------------------------------------------------------------
# Pallas kernel
# -------------------------------------------------------------------------
def _tri_pe_kernel(coord_ref, inv_ref, off_ref, out_ref, *,
                   thw, w, stride, seq_len, d1):
    # coord_ref : (B, 2) int32 in SMEM (scalar-prefetched) -> (y_start, x_start)
    # inv_ref   : (2*D1, 1) f32  per-channel 1/div  (x channels then y channels)
    # off_ref   : (2*D1, 1) f32  per-channel offset
    # out_ref   : (1, 2*D1, thw) f32 tile for (batch b, lane-tile j)
    b = pl.program_id(0)
    j = pl.program_id(1)

    y0 = coord_ref[b, 0]
    x0 = coord_ref[b, 1]

    # Flattened (row-major) pixel index of this lane tile, generated in-kernel.
    local = lax.broadcasted_iota(jnp.int32, (1, thw), 1)
    flat = j * thw + local

    if _is_pow2(w):
        row = flat >> (w.bit_length() - 1)
        col = flat & (w - 1)
    else:
        row = flat // w
        col = flat - row * w
    if stride != 1:
        row = row * stride
        col = col * stride
    full_x = x0 + col   # (1, thw) int32
    full_y = y0 + row   # (1, thw) int32

    if _is_pow2(seq_len):
        # Two's-complement AND == floored mod for a power-of-two modulus, so
        # negative coordinates behave exactly like torch's % as well.
        cx = (full_x & (seq_len - 1)).astype(jnp.float32)
        cy = (full_y & (seq_len - 1)).astype(jnp.float32)
    else:
        cx = jnp.mod(full_x, seq_len).astype(jnp.float32)
        cy = jnp.mod(full_y, seq_len).astype(jnp.float32)

    c_out = 2 * d1
    # (2*D1, thw) coordinate plane: rows [0, D1) -> x, rows [D1, 2*D1) -> y
    # (single sublane-broadcast select; matches torch.cat([enc_x, enc_y]) order).
    ch = lax.broadcasted_iota(jnp.int32, (c_out, 1), 0)
    coords = jnp.where(ch < d1, cx, cy)                    # (2*D1, thw)

    z = coords * inv_ref[...] - off_ref[...]               # (2*D1, thw)
    # tri(c/div, offset) = 2*|((c/div - offset) mod 2) - 1| - 1, one dense store.
    out_ref[0, :, :] = 2.0 * jnp.abs(jnp.mod(z, 2.0) - 1.0) - 1.0


# -------------------------------------------------------------------------
# Wrapper
# -------------------------------------------------------------------------
_DEFAULT_MAX_LANE_TILE = 32768  # lane elements per grid step (multiple of 128)


def triangular_positional_encoding_2d(
    coordinates, h, w, stride=1, *,
    sequence_length=8, octaves=3, include_constant=True,
    max_lane_elems=_DEFAULT_MAX_LANE_TILE,
):
    inv_divs, offsets = build_channel_tables(octaves, include_constant)
    d1 = len(inv_divs)
    c_out = 2 * d1
    b = coordinates.shape[0]
    hw = h * w

    # Lane tile: full extent if small, else a 128-multiple tile (output stays
    # lane-dense; VMEM per step ~= 2 buffers * c_out * thw * 4 bytes).
    if hw <= max_lane_elems:
        thw = hw
    else:
        thw = max(128, (max_lane_elems // 128) * 128)
    nj = pl.cdiv(hw, thw)

    # Per-channel tables for both halves (x then y), kept resident in VMEM.
    inv_arr = jnp.asarray(inv_divs * 2, dtype=jnp.float32).reshape(c_out, 1)
    off_arr = jnp.asarray(offsets * 2, dtype=jnp.float32).reshape(c_out, 1)

    kernel = functools.partial(
        _tri_pe_kernel, thw=thw, w=w, stride=stride,
        seq_len=sequence_length, d1=d1,
    )

    out_flat = pl.pallas_call(
        kernel,
        out_shape=jax.ShapeDtypeStruct((b, c_out, hw), jnp.float32),
        grid_spec=pltpu.PrefetchScalarGridSpec(
            num_scalar_prefetch=1,               # coordinates -> SMEM
            grid=(b, nj),
            in_specs=[
                pl.BlockSpec((c_out, 1), lambda bi, ji, coords: (0, 0)),  # inv
                pl.BlockSpec((c_out, 1), lambda bi, ji, coords: (0, 0)),  # off
            ],
            out_specs=pl.BlockSpec((1, c_out, thw),
                                   lambda bi, ji, coords: (bi, 0, ji)),
        ),
        compiler_params=pltpu.CompilerParams(
            dimension_semantics=("parallel", "parallel"),
            vmem_limit_bytes=32 * 1024 * 1024,
        ),
    )(coordinates.astype(jnp.int32), inv_arr, off_arr)

    # Glue reshape to NCHW: (B, 2*D1, H, W)
    return out_flat.reshape(b, c_out, h, w)


# -------------------------------------------------------------------------
# Pure-JAX reference (mirrors the PyTorch table-gather forward)
# -------------------------------------------------------------------------
def _reference(coordinates, h, w, stride, sequence_length, octaves, include_constant):
    x = jnp.arange(sequence_length, dtype=jnp.float32)
    rows = []
    for octave in range(octaves):
        div = float(2 ** octave)
        for i, offset in enumerate((0.0, 0.5)):
            if octave == 0 and i == 1:
                continue
            rows.append(2.0 * jnp.abs(jnp.mod(x / div - offset, 2.0) - 1.0) - 1.0)
    if include_constant:
        rows.append(jnp.zeros(sequence_length, dtype=jnp.float32))
    table = jnp.stack(rows)  # (D1, L)

    full_x, full_y = convert_coordinate_start(coordinates, h, w, stride)
    b = coordinates.shape[0]

    def enc(full):
        idx = jnp.mod(full, sequence_length)   # (B, HW), floored -> non-negative
        gathered = table[:, idx]               # (D1, B, HW)
        return jnp.transpose(gathered, (1, 0, 2)).reshape(b, -1, h, w)

    return jnp.concatenate([enc(full_x), enc(full_y)], axis=1)


# -------------------------------------------------------------------------
# Demo / correctness check
# -------------------------------------------------------------------------
if __name__ == "__main__":
    key = jax.random.PRNGKey(0)
    SEQ_LEN, OCTAVES, INCLUDE_CONST = 8, 3, True
    C_OUT = 2 * (2 * OCTAVES - 1 + int(INCLUDE_CONST))

    # Test 1: small window, single lane tile.
    B, H, W, STRIDE = 2, 16, 16, 1
    k1, k2 = jax.random.split(key)
    coords1 = jax.random.randint(k1, (B, 2), 0, 32, dtype=jnp.int32)
    out1 = triangular_positional_encoding_2d(
        coords1, H, W, STRIDE,
        sequence_length=SEQ_LEN, octaves=OCTAVES, include_constant=INCLUDE_CONST)
    out1 = jax.block_until_ready(out1)
    ref1 = _reference(coords1, H, W, STRIDE, SEQ_LEN, OCTAVES, INCLUDE_CONST)
    assert out1.shape == (B, C_OUT, H, W), out1.shape
    assert out1.dtype == jnp.float32
    assert bool(jnp.allclose(out1, ref1, atol=1e-6)), "test1 mismatch vs reference"

    # Test 2: multiple lane tiles, stride=2, negative window starts.
    B2, H2, W2, STRIDE2 = 3, 32, 32, 2
    coords2 = jax.random.randint(k2, (B2, 2), -16, 16, dtype=jnp.int32)
    out2 = triangular_positional_encoding_2d(
        coords2, H2, W2, STRIDE2,
        sequence_length=SEQ_LEN, octaves=OCTAVES, include_constant=INCLUDE_CONST,
        max_lane_elems=512)  # force a (3, 2) grid
    out2 = jax.block_until_ready(out2)
    ref2 = _reference(coords2, H2, W2, STRIDE2, SEQ_LEN, OCTAVES, INCLUDE_CONST)
    assert out2.shape == (B2, C_OUT, H2, W2), out2.shape
    assert bool(jnp.allclose(out2, ref2, atol=1e-6)), "test2 mismatch vs reference"

    print("KERNEL_OK")
</pallas_src>

<mosaic_0001>
module attributes {stable_mosaic.version = 11 : i64} {
  func.func @_tri_pe_kernel(%arg0: i32, %arg1: i32, %arg2: memref<2x2xi32, #tpu.memory_space<smem>>, %arg3: memref<12x1xf32, #tpu.memory_space<vmem>>, %arg4: memref<12x1xf32, #tpu.memory_space<vmem>>, %arg5: memref<1x12x256xf32, #tpu.memory_space<vmem>>) attributes {dimension_semantics = [#tpu.dimension_semantics<parallel>, #tpu.dimension_semantics<parallel>], iteration_bounds = array<i64: 2, 1>, scalar_prefetch = 1 : i64, scratch_operands = 0 : i64, tpu.core_type = #tpu.core_type<tc>, window_params = [{pipeline_mode = #tpu.pipeline_mode<synchronous>, transform_indices = @transform_0, window_bounds = array<i64: 12, 1>}, {pipeline_mode = #tpu.pipeline_mode<synchronous>, transform_indices = @transform_1, window_bounds = array<i64: 12, 1>}, {transform_indices = @transform_2, window_bounds = array<i64: 1, 12, 256>}]} {
    %0 = arith.index_cast %arg0 : i32 to index
    %c0 = arith.constant 0 : index
    %1 = memref.load %arg2[%0, %c0] : memref<2x2xi32, #tpu.memory_space<smem>>
    %2 = arith.index_cast %arg0 : i32 to index
    %c1 = arith.constant 1 : index
    %3 = memref.load %arg2[%2, %c1] : memref<2x2xi32, #tpu.memory_space<smem>>
    %4 = tpu.iota {dimensions = array<i32: 1>} : vector<1x256xi32>
    %c256_i32 = arith.constant 256 : i32
    %5 = arith.muli %arg1, %c256_i32 : i32
    %6 = vector.broadcast %5 : i32 to vector<1x256xi32>
    %7 = arith.addi %6, %4 : vector<1x256xi32>
    %c4_i32 = arith.constant 4 : i32
    %8 = vector.broadcast %c4_i32 : i32 to vector<1x256xi32>
    %9 = arith.shrsi %7, %8 : vector<1x256xi32>
    %c15_i32 = arith.constant 15 : i32
    %10 = vector.broadcast %c15_i32 : i32 to vector<1x256xi32>
    %11 = arith.andi %7, %10 : vector<1x256xi32>
    %12 = vector.broadcast %3 : i32 to vector<1x256xi32>
    %13 = arith.addi %12, %11 : vector<1x256xi32>
    %14 = vector.broadcast %1 : i32 to vector<1x256xi32>
    %15 = arith.addi %14, %9 : vector<1x256xi32>
    %c7_i32 = arith.constant 7 : i32
    %16 = vector.broadcast %c7_i32 : i32 to vector<1x256xi32>
    %17 = arith.andi %13, %16 : vector<1x256xi32>
    %18 = arith.sitofp %17 : vector<1x256xi32> to vector<1x256xf32>
    %c7_i32_0 = arith.constant 7 : i32
    %19 = vector.broadcast %c7_i32_0 : i32 to vector<1x256xi32>
    %20 = arith.andi %15, %19 : vector<1x256xi32>
    %21 = arith.sitofp %20 : vector<1x256xi32> to vector<1x256xf32>
    %22 = tpu.iota {dimensions = array<i32: 0>} : vector<12x1xi32>
    %c6_i32 = arith.constant 6 : i32
    %23 = vector.broadcast %c6_i32 : i32 to vector<12x1xi32>
    %24 = arith.cmpi slt, %22, %23 : vector<12x1xi32>
    %25 = vector.shape_cast %24 : vector<12x1xi1> to vector<12x1xi1>
    %26 = vector.broadcast %25 : vector<12x1xi1> to vector<12x256xi1>
    %27 = vector.shape_cast %18 : vector<1x256xf32> to vector<1x256xf32>
    %28 = vector.broadcast %27 : vector<1x256xf32> to vector<12x256xf32>
    %29 = vector.shape_cast %21 : vector<1x256xf32> to vector<1x256xf32>
    %30 = vector.broadcast %29 : vector<1x256xf32> to vector<12x256xf32>
    %31 = arith.select %26, %28, %30 : vector<12x256xi1>, vector<12x256xf32>
    %c0_1 = arith.constant 0 : index
    %c0_2 = arith.constant 0 : index
    %32 = vector.load %arg3[%c0_1, %c0_2] : memref<12x1xf32, #tpu.memory_space<vmem>>, vector<12x1xf32>
    %33 = vector.broadcast %32 : vector<12x1xf32> to vector<12x256xf32>
    %34 = arith.mulf %31, %33 : vector<12x256xf32>
    %c0_3 = arith.constant 0 : index
    %c0_4 = arith.constant 0 : index
    %35 = vector.load %arg4[%c0_3, %c0_4] : memref<12x1xf32, #tpu.memory_space<vmem>>, vector<12x1xf32>
    %36 = vector.broadcast %35 : vector<12x1xf32> to vector<12x256xf32>
    %37 = arith.subf %34, %36 : vector<12x256xf32>
    %cst = arith.constant 2.000000e+00 : f32
    %38 = vector.broadcast %cst : f32 to vector<12x256xf32>
    %39 = arith.remf %37, %38 : vector<12x256xf32>
    %cst_5 = arith.constant 0.000000e+00 : f32
    %40 = vector.broadcast %cst_5 : f32 to vector<12x256xf32>
    %41 = arith.cmpf one, %39, %40 : vector<12x256xf32>
    %cst_6 = arith.constant 0.000000e+00 : f32
    %42 = vector.broadcast %cst_6 : f32 to vector<12x256xf32>
    %43 = arith.cmpf olt, %39, %42 : vector<12x256xf32>
    %cst_7 = arith.constant 0.000000e+00 : f32
    %44 = arith.cmpf olt, %cst, %cst_7 : f32
    %45 = vector.broadcast %44 : i1 to vector<12x256xi1>
    %46 = vector.broadcast %45 : vector<12x256xi1> to vector<12x256xi1>
    %47 = arith.xori %43, %46 : vector<12x256xi1>
    %48 = arith.andi %47, %41 : vector<12x256xi1>
    %49 = vector.broadcast %cst : f32 to vector<12x256xf32>
    %50 = arith.addf %39, %49 : vector<12x256xf32>
    %51 = arith.select %48, %50, %39 : vector<12x256xi1>, vector<12x256xf32>
    %cst_8 = arith.constant 1.000000e+00 : f32
    %52 = vector.broadcast %cst_8 : f32 to vector<12x256xf32>
    %53 = arith.subf %51, %52 : vector<12x256xf32>
    %54 = math.absf %53 : vector<12x256xf32>
    %cst_9 = arith.constant 2.000000e+00 : f32
    %55 = vector.broadcast %cst_9 : f32 to vector<12x256xf32>
    %56 = arith.mulf %55, %54 : vector<12x256xf32>
    %cst_10 = arith.constant 1.000000e+00 : f32
    %57 = vector.broadcast %cst_10 : f32 to vector<12x256xf32>
    %58 = arith.subf %56, %57 : vector<12x256xf32>
    %c0_11 = arith.constant 0 : index
    %c0_12 = arith.constant 0 : index
    %c0_13 = arith.constant 0 : index
    %59 = vector.load %arg5[%c0_11, %c0_12, %c0_13] : memref<1x12x256xf32, #tpu.memory_space<vmem>>, vector<1x12x256xf32>
    %60 = vector.shape_cast %59 : vector<1x12x256xf32> to vector<12x256xf32>
    %61 = vector.shape_cast %58 : vector<12x256xf32> to vector<1x12x256xf32>
    tpu.vector_store %arg5[%c0_11, %c0_12, %c0_13], %61 {strides = array<i32>} : memref<1x12x256xf32, #tpu.memory_space<vmem>>, vector<1x12x256xf32>,
    return
  }
  func.func @transform_0(%arg0: i32, %arg1: i32, %arg2: memref<2x2xi32, #tpu.memory_space<smem>>) -> (i32, i32) {
    %c0_i32 = arith.constant 0 : i32
    %c0_i32_0 = arith.constant 0 : i32
    %c0_i32_1 = arith.constant 0 : i32
    return %c0_i32, %c0_i32_0 : i32, i32
  }
  func.func @transform_1(%arg0: i32, %arg1: i32, %arg2: memref<2x2xi32, #tpu.memory_space<smem>>) -> (i32, i32) {
    %c0_i32 = arith.constant 0 : i32
    %c0_i32_0 = arith.constant 0 : i32
    %c0_i32_1 = arith.constant 0 : i32
    return %c0_i32, %c0_i32_0 : i32, i32
  }
  func.func @transform_2(%arg0: i32, %arg1: i32, %arg2: memref<2x2xi32, #tpu.memory_space<smem>>) -> (i32, i32, i32) {
    %c0_i32 = arith.constant 0 : i32
    %c0_i32_0 = arith.constant 0 : i32
    return %arg0, %c0_i32, %arg1 : i32, i32, i32
  }
}

</mosaic_0001>

<llo_original>
// kernel: tpu_custom_call.1
$region0: #{tpu_custom_call.1}
  #allocation0 [shape = 'u32[]', space=smem, size = 0x4, offset = 0x4, fixed_abs, tag = 'smem constant byte address 0x4 - core index']
  #allocation1 [shape = 'u32[144,128]{1,0:T(1,128)}', space=vmem, size = 0x12000, scoped, tag = 'internal scratch']
  #allocation2 [shape = 's32[1]{0}', space=sflag, size = 0x4, scoped, tag = 'scoped memory for tpu_custom_call.1']
  #allocation3 [shape = 'u8[1024]{0}', space=smem, size = 0x400, scoped, tag = 'prefetched SMEM operand 0']
  %s0 = inlined_call_operand.vmem [shape: s32[2,2], index: 0, kind: input, shape index: {}]
  %s1 = inlined_call_operand.vmem [shape: f32[12,1], index: 1, kind: input, shape index: {}]
  %s2 = inlined_call_operand.vmem [shape: f32[12,1], index: 2, kind: input, shape index: {}]
  %s3 = inlined_call_operand.vmem [shape: f32[2,12,256], index: 3, kind: output, shape index: {}]
  %s4 = sld [smem:[#allocation0]]
  $region41: #{tpu_custom_call.1} parent=0
    _
  %s6 = ssub.s32 1, %s4
  %s7 = scalar_select 0, %s6, %s4
  %s8 = sshll.u32 %s0, 4
  %s9 = int_to_ptr.vmem [resolvable:$true] %s8
  %11 = dma.vmem_to_smem %s9, 32, [#allocation3], [#allocation2]
  %12 = dma.done [#allocation2], 32
  %13 = sfence
  loop: start=0, step=1, limit=4
  $region2: #{tpu_custom_call.1} parent=0 // loop_pre_header
    _
  $region3: #{tpu_custom_call.1} parent=0 // loop_header
    %s15 = sphi 0, %s19
    %p16 = scmp.ge.s32.totalorder %s15, 4
    %s22 = sphi 0, %s34
    %s23 = sphi 0, %s30
    %s24 = sphi 0, %s22
    %s25 = sphi 0, %s23
    %s26 = sphi 0, %s24
    %s27 = sphi 0, %s25
    %s35 = sphi 0, %s35
    %s37 = sphi 0, %s35
    %s38 = sphi 0, %s37
    %s52 = sphi 0, %s38
    %s56 = sphi 0, %s56
    %s58 = sphi 0, %s56
    %s59 = sphi 0, %s58
    %s73 = sphi 0, %s59
    %s81 = sphi 0, %s83
    %s84 = sphi 0, %s81
    %s85 = sphi 0, %s84
    %s101 = sphi 0, %s85
  $region4: #{tpu_custom_call.1} parent=0 // loop_header_branch
    %18 = sbr.rel (%p16) target = $region8
  $region5: #{tpu_custom_call.1} parent=0 // loop_body
    %s20 = ssub.s32 %s15, 1
    %s21 = ssub.s32 %s15, 2
    %s28 = sadd.s32 1, %s23
    %p29 = scmp.ge.s32.totalorder %s28, 1
    %s30 = scalar_select %p29, 0, %s28
    %s31 = sadd.s32 1, %s22
    %s32 = scalar_select %p29, %s31, %s22
    %p33 = scmp.ge.s32.totalorder %s32, 2
    %s34 = scalar_select %p33, 0, %s32
    %s36 = sadd.s32 %s35, 1
    %p39 = scmp.eq.s32.totalorder %s15, 1
    %p40 = scmp.ne.s32.totalorder %s35, %s37
    %p41 = scmp.eq.s32.totalorder %s15, 0
    %p42 = por %p40, %p41
    %p43 = scmp.ne.s32.totalorder %s35, %s37
    %p44 = scmp.eq.s32.totalorder %s20, 1
    %p45 = por %p43, %p44
    %p46 = scmp.ne.s32.totalorder %s37, %s38
    %p47 = scmp.eq.s32.totalorder %s20, 0
    %p48 = por %p46, %p47
    %p49 = scmp.ne.s32.totalorder %s37, %s38
    %p50 = scmp.eq.s32.totalorder %s21, 1
    %p51 = por %p49, %p50
    %p53 = scmp.ne.s32.totalorder %s38, %s52
    %p54 = scmp.eq.s32.totalorder %s21, 0
    %p55 = por %p53, %p54
    %s57 = sadd.s32 %s56, 1
    %p60 = scmp.eq.s32.totalorder %s15, 1
    %p61 = scmp.ne.s32.totalorder %s56, %s58
    %p62 = scmp.eq.s32.totalorder %s15, 0
    %p63 = por %p61, %p62
    %p64 = scmp.ne.s32.totalorder %s56, %s58
    %p65 = scmp.eq.s32.totalorder %s20, 1
    %p66 = por %p64, %p65
    %p67 = scmp.ne.s32.totalorder %s58, %s59
    %p68 = scmp.eq.s32.totalorder %s20, 0
    %p69 = por %p67, %p68
    %p70 = scmp.ne.s32.totalorder %s58, %s59
    %p71 = scmp.eq.s32.totalorder %s21, 1
    %p72 = por %p70, %p71
    %p74 = scmp.ne.s32.totalorder %s59, %s73
    %p75 = scmp.eq.s32.totalorder %s21, 0
    %p76 = por %p74, %p75
    %s77 = ssub.s32 %s22, %s34
    %s78 = ssub.s32 %s23, %s30
    %s79 = sor.u32 %s77, %s78
    %p80 = scmp.eq.s32.totalorder %s79, 0
    %s82 = sadd.s32 %s81, 1
    %s83 = scalar_select %p80, %s81, %s82
    %p86 = pneg %p80
    %p87 = scmp.eq.s32.totalorder %s15, 1
    %p88 = por %p86, %p87
    %p89 = scmp.ne.s32.totalorder %s81, %s84
    %p90 = scmp.eq.s32.totalorder %s15, 0
    %p91 = por %p89, %p90
    %p92 = scmp.ne.s32.totalorder %s81, %s84
    %p93 = scmp.eq.s32.totalorder %s20, 1
    %p94 = por %p92, %p93
    %p95 = scmp.ne.s32.totalorder %s84, %s85
    %p96 = scmp.eq.s32.totalorder %s20, 0
    %p97 = por %p95, %p96
    %p98 = scmp.ne.s32.totalorder %s84, %s85
    %p99 = scmp.eq.s32.totalorder %s21, 1
    %p100 = por %p98, %p99
    %p102 = scmp.ne.s32.totalorder %s85, %s101
    %p103 = scmp.eq.s32.totalorder %s21, 0
    %p104 = por %p102, %p103
    %p105 = scmp.le.s32.totalorder 1, %s15
    %p106 = scmp.lt.s32.totalorder %s15, 3
    %p107 = pnand %p105, %p106
    %p108 = pneg %p107
    // Predicated region
    $region9: #{tpu_custom_call.1} parent=5 // pred_check
      _
    $region10: #{tpu_custom_call.1} parent=5 // pred_check_branch
      %110 = sbr.rel (%p107) target = $region12
    $region11: #{tpu_custom_call.1} parent=5 // pred_region
      %s111 = ssub.s32 %s15, 1
      // Predicated region
      $region13: #{tpu_custom_call.1} parent=11 // pred_check
        %p112 = pneg %p48
      $region14: #{tpu_custom_call.1} parent=11 // pred_check_branch
        %114 = sbr.rel (%p112) target = $region16
      $region15: #{tpu_custom_call.1} parent=11 // pred_region
        _
      $region16: #{tpu_custom_call.1} parent=11 // pred_fallthru
        _
      // Predicated region
      $region17: #{tpu_custom_call.1} parent=11 // pred_check
        %p115 = pneg %p69
      $region18: #{tpu_custom_call.1} parent=11 // pred_check_branch
        %117 = sbr.rel (%p115) target = $region20
      $region19: #{tpu_custom_call.1} parent=11 // pred_region
        _
      $region20: #{tpu_custom_call.1} parent=11 // pred_fallthru
        _
    $region12: #{tpu_custom_call.1} parent=5 // pred_fallthru
      _
    %p118 = scmp.lt.s32.totalorder %s15, 2
    // Predicated region
    $region21: #{tpu_custom_call.1} parent=5 // pred_check
      %p119 = pneg %p118
    $region22: #{tpu_custom_call.1} parent=5 // pred_check_branch
      %121 = sbr.rel (%p119) target = $region24
    $region23: #{tpu_custom_call.1} parent=5 // pred_region
      _
    $region24: #{tpu_custom_call.1} parent=5 // pred_fallthru
      _
    %p122 = scmp.le.s32.totalorder 1, %s15
    %p123 = scmp.lt.s32.totalorder %s15, 3
    %p124 = pnand %p122, %p123
    %p125 = pneg %p124
    // Predicated region
    $region25: #{tpu_custom_call.1} parent=5 // pred_check
      _
    $region26: #{tpu_custom_call.1} parent=5 // pred_check_branch
      %127 = sbr.rel (%p124) target = $region28
    $region27: #{tpu_custom_call.1} parent=5 // pred_region
      %s128 = ssub.s32 %s15, 1
      %p129 = pneg %p48
      %p130 = pneg %p45
      %p131 = pneg %p69
      %p132 = pneg %p66
      %p133 = pneg %p97
      %p134 = pneg %p94
      %s135 = smul.u32 2, %s25
      %p136 = scmp.lt.s32.totalorder %s24, 1
      %s137 = scalar_select %p136, %s24, 1
      %p138 = scmp.lt.s32.totalorder %s135, 1
      %s139 = scalar_select %p138, %s135, 1
      %s140 = smul.addr %s137, 4
      %s141 = sadd.s32 %s139, %s140
      %s142 = smul.addr %s141, 8
      %s143 = scalar_lea.vmem %s3, %s142
      %s144 = smul.u32 2, %s25
      %p145 = scmp.lt.s32.totalorder %s24, 1
      %s146 = scalar_select %p145, %s24, 1
      %p147 = scmp.lt.s32.totalorder %s144, 1
      %s148 = scalar_select %p147, %s144, 1
      %s149 = smul.addr %s146, 4
      %s150 = sadd.s32 %s148, %s149
      %s151 = smul.addr %s150, 8
      %s152 = scalar_lea.vmem %s3, %s151
      %s153 = smul.u32 2, %s25
      %s154 = smul.u32 %s24, 128
      %s155 = sld [smem:[#allocation3 + %s154]]
      %s156 = sadd.s32 %s154, 1
      %s157 = sld [smem:[#allocation3 + %s156]]
      %v158 = vlaneseq
      %v159 = vand.u32 %v158, 127
      %v160 = vadd.s32 %v159, 128
      %s161 = smul.u32 %s25, 256
      %v162 = vstv %s161
      %v163 = vadd.s32 %v162, %v159
      %v164 = vadd.s32 %v162, %v160
      %v165 = vshra.s32 %v163, 4
      %v166 = vshra.s32 %v164, 4
      %v167 = vand.u32 %v163, 15
      %v168 = vand.u32 %v164, 15
      %v169 = vstv %s157
      %v170 = vadd.s32 %v169, %v167
      %v171 = vadd.s32 %v169, %v168
      %v172 = vstv %s155
      %v173 = vadd.s32 %v172, %v165
      %v174 = vadd.s32 %v172, %v166
      %v175 = vand.u32 %v170, 7
      %v176 = vand.u32 %v171, 7
      %v177 = vcvt.s32.f32 %v175
      %v178 = vcvt.s32.f32 %v176
      %v179 = vand.u32 %v173, 7
      %v180 = vand.u32 %v174, 7
      %v181 = vcvt.s32.f32 %v179
      %v182 = vcvt.s32.f32 %v180
      %v183 = vlaneseq
      %v184 = vshrl.u32 %v183, 7
      %v185 = vadd.s32 %v184, 8
      %vm186 = vcmp.lt.s32.totalorder %v184, 6
      %vm187 = vcmp.lt.s32.totalorder %v185, 6
      %v188 = vsel %vm186, 1, 0
      %v189 = vsel %vm187, 1, 0
      %vm190 = vcmp.eq.s32.totalorder %v188, 1
      %vm191 = vcmp.eq.s32.totalorder %v189, 1
      %v192 = vsel %vm190, %v177, %v181
      %v193 = vsel %vm190, %v178, %v182
      %v194 = vsel %vm191, %v177, %v181
      %v195 = vsel %vm191, %v178, %v182
      %v196 = vld [vmem:[%s1] sm:$0xff]
      %v197 = vld [vmem:[%s1 + $0x8] sm:$0xf]
      %199 = vset.pattern.permute.xlu0 0
      %200 = vperm.xlu0 %199, %v196
      %v201 = vpop.permute.xlu0 %200
      %204 = vset.pattern.permute.xlu0 0
      %205 = vperm.xlu0 %204, %v197
      %v206 = vpop.permute.xlu0 %205
      %v208 = vmul.f32 %v192, %v201
      %v209 = vmul.f32 %v193, %v201
      %v210 = vmul.f32 %v194, %v206
      %v211 = vmul.f32 %v195, %v206
      %v212 = vld [vmem:[%s2] sm:$0xff]
      %v213 = vld [vmem:[%s2 + $0x8] sm:$0xf]
      %215 = vset.pattern.permute.xlu0 0
      %216 = vperm.xlu0 %215, %v212
      %v217 = vpop.permute.xlu0 %216
      %220 = vset.pattern.permute.xlu0 0
      %221 = vperm.xlu0 %220, %v213
      %v222 = vpop.permute.xlu0 %221
      %v224 = vsub.f32 %v208, %v217
      %v225 = vsub.f32 %v209, %v217
      %v226 = vsub.f32 %v210, %v222
      %v227 = vsub.f32 %v211, %v222
      %v228 = vand.u32 2147483647, %v224
      %v229 = vrcp.pop 2.0
      %v230 = vmul.f32 %v228, %v229
      %v231 = vfloor.f32 %v230
      %v232 = vmul.f32 %v231, 2.0
      %v233 = vsub.f32 %v228, %v232
      %vm234 = vcmp.eq.f32.partialorder %v233, 2.0
      %v235 = vsel %vm234, 0.0, %v233
      %v236 = vand.u32 2147483647, %v235
      %v237 = vand.u32 %v224, 2147483648
      %v238 = vor.u32 %v236, %v237
      %v239 = vand.u32 2147483647, %v225
      %v240 = vrcp.pop 2.0
      %v241 = vmul.f32 %v239, %v240
      %v242 = vfloor.f32 %v241
      %v243 = vmul.f32 %v242, 2.0
      %v244 = vsub.f32 %v239, %v243
      %vm245 = vcmp.eq.f32.partialorder %v244, 2.0
      %v246 = vsel %vm245, 0.0, %v244
      %v247 = vand.u32 2147483647, %v246
      %v248 = vand.u32 %v225, 2147483648
      %v249 = vor.u32 %v247, %v248
      %v250 = vand.u32 2147483647, %v226
      %v251 = vrcp.pop 2.0
      %v252 = vmul.f32 %v250, %v251
      %v253 = vfloor.f32 %v252
      %v254 = vmul.f32 %v253, 2.0
      %v255 = vsub.f32 %v250, %v254
      %vm256 = vcmp.eq.f32.partialorder %v255, 2.0
      %v257 = vsel %vm256, 0.0, %v255
      %v258 = vand.u32 2147483647, %v257
      %v259 = vand.u32 %v226, 2147483648
      %v260 = vor.u32 %v258, %v259
      %v261 = vand.u32 2147483647, %v227
      %v262 = vrcp.pop 2.0
      %v263 = vmul.f32 %v261, %v262
      %v264 = vfloor.f32 %v263
      %v265 = vmul.f32 %v264, 2.0
      %v266 = vsub.f32 %v261, %v265
      %vm267 = vcmp.eq.f32.partialorder %v266, 2.0
      %v268 = vsel %vm267, 0.0, %v266
      %v269 = vand.u32 2147483647, %v268
      %v270 = vand.u32 %v227, 2147483648
      %v271 = vor.u32 %v269, %v270
      %vm272 = vcmp.ne.f32.partialorder %v238, 0.0
      %vm273 = vcmp.ne.f32.partialorder %v249, 0.0
      %vm274 = vcmp.ne.f32.partialorder %v260, 0.0
      %vm275 = vcmp.ne.f32.partialorder %v271, 0.0
      %vm276 = vcmp.lt.f32.partialorder %v238, 0.0
      %vm277 = vcmp.lt.f32.partialorder %v249, 0.0
      %vm278 = vcmp.lt.f32.partialorder %v260, 0.0
      %vm279 = vcmp.lt.f32.partialorder %v271, 0.0
      %vm280 = vmand %vm276, %vm272
      %vm281 = vmand %vm277, %vm273
      %vm282 = vmand %vm278, %vm274
      %vm283 = vmand %vm279, %vm275
      %v284 = vadd.f32 %v238, 2.0
      %v285 = vadd.f32 %v249, 2.0
      %v286 = vadd.f32 %v260, 2.0
      %v287 = vadd.f32 %v271, 2.0
      %v288 = vsel %vm280, %v284, %v238
      %v289 = vsel %vm281, %v285, %v249
      %v290 = vsel %vm282, %v286, %v260
      %v291 = vsel %vm283, %v287, %v271
      %v292 = vsub.f32 %v288, 1.0
      %v293 = vsub.f32 %v289, 1.0
      %v294 = vsub.f32 %v290, 1.0
      %v295 = vsub.f32 %v291, 1.0
      %v296 = vand.u32 2147483647, %v292
      %v297 = vand.u32 2147483647, %v293
      %v298 = vand.u32 2147483647, %v294
      %v299 = vand.u32 2147483647, %v295
      %v300 = vmul.f32 %v296, 2.0
      %v301 = vmul.f32 %v297, 2.0
      %v302 = vmul.f32 %v298, 2.0
      %v303 = vmul.f32 %v299, 2.0
      %v304 = vsub.f32 %v300, 1.0
      %v305 = vsub.f32 %v301, 1.0
      %v306 = vsub.f32 %v302, 1.0
      %v307 = vsub.f32 %v303, 1.0
      %308 = vst [vmem:[%s152] sm:$0xff] %v304
      %309 = vst [vmem:[%s152 + $0x8] sm:$0xff] %v305
      %310 = vst [vmem:[%s152 + $0x10] sm:$0xf] %v306
      %311 = vst [vmem:[%s152 + $0x18] sm:$0xf] %v307
      %s312 = smul.u32 2, %s25
      %p313 = scmp.lt.s32.totalorder %s24, 1
      %s314 = scalar_select %p313, %s24, 1
      %p315 = scmp.lt.s32.totalorder %s312, 1
      %s316 = scalar_select %p315, %s312, 1
      %s317 = smul.addr %s314, 4
      %s318 = sadd.s32 %s316, %s317
      %s319 = smul.addr %s318, 8
      %s320 = scalar_lea.vmem %s3, %s319
      // Predicated region
      $region29: #{tpu_custom_call.1} parent=27 // pred_check
        %p321 = pneg %p94
      $region30: #{tpu_custom_call.1} parent=27 // pred_check_branch
        %323 = sbr.rel (%p321) target = $region32
      $region31: #{tpu_custom_call.1} parent=27 // pred_region
        %s324 = smul.u32 2, %s25
      $region32: #{tpu_custom_call.1} parent=27 // pred_fallthru
        _
    $region28: #{tpu_custom_call.1} parent=5 // pred_fallthru
      _
    %p325 = scmp.le.s32.totalorder 2, %s15
    // Predicated region
    $region33: #{tpu_custom_call.1} parent=5 // pred_check
      %p326 = pneg %p325
    $region34: #{tpu_custom_call.1} parent=5 // pred_check_branch
      %328 = sbr.rel (%p326) target = $region36
    $region35: #{tpu_custom_call.1} parent=5 // pred_region
      %s329 = ssub.s32 %s15, 2
      // Predicated region
      $region37: #{tpu_custom_call.1} parent=35 // pred_check
        %p330 = pneg %p100
      $region38: #{tpu_custom_call.1} parent=35 // pred_check_branch
        %332 = sbr.rel (%p330) target = $region40
      $region39: #{tpu_custom_call.1} parent=35 // pred_region
        %s333 = smul.u32 2, %s27
        %p334 = scmp.lt.s32.totalorder %s26, 1
        %s335 = scalar_select %p334, %s26, 1
        %p336 = scmp.lt.s32.totalorder %s333, 1
        %s337 = scalar_select %p336, %s333, 1
        %s338 = smul.addr %s335, 4
        %s339 = sadd.s32 %s337, %s338
        %s340 = smul.addr %s339, 8
        %s341 = scalar_lea.vmem %s3, %s340
      $region40: #{tpu_custom_call.1} parent=35 // pred_fallthru
        _
    $region36: #{tpu_custom_call.1} parent=5 // pred_fallthru
      _
  $region6: #{tpu_custom_call.1} parent=0 // loop_footer
    %s19 = sadd.s32 1, %s15
  $region7: #{tpu_custom_call.1} parent=0 // loop_footer_branch
    %14 = sbr.rel target = $region3
  $region8: #{tpu_custom_call.1} parent=0 // loop_exit
    _

</llo_original>
